<compile_context>
chip_gen: v5e
topology: v5e:2x2
jax: 0.10.0
libtpu: 0.0.40
codegen_flags: <defaults>
</compile_context>

<pallas_src>
import functools
import math

import jax
import jax.numpy as jnp
from jax.experimental import pallas as pl
from jax.experimental.pallas import tpu as pltpu

LN_EPS = 1e-5          # torch.nn.LayerNorm default eps (elementwise_affine=False)
NEG_INF = -1e9         # matches QK.masked_fill_(mask, -1000000000.0)
BF16 = jnp.bfloat16


def _seq_tile(s):
    """Largest seq tile (multiple of 8, <= 512) dividing s; fall back to s."""
    for ts in (512, 256, 128, 64, 32, 16, 8):
        if s % ts == 0:
            return ts
    return s


def _tile(dim, cap):
    """cap if it evenly tiles dim, else the full dim (small-shape fallback)."""
    return cap if (dim >= cap and dim % cap == 0) else dim


# ----------------------------------------------------------------------------
# Positional encoding table (same math as the torch __init__)
# ----------------------------------------------------------------------------
def make_positional_encoding(d_model, max_len=5000, dtype=jnp.float32):
    position = jnp.arange(max_len, dtype=jnp.float32)[:, None]
    t1 = jnp.arange(0, d_model, 2, dtype=jnp.float32)
    div_term = jnp.exp(t1 * (-math.log(10000.0) / d_model))
    angles = position * div_term
    pe = jnp.zeros((max_len, d_model), jnp.float32)
    pe = pe.at[:, 0::2].set(jnp.sin(angles))
    pe = pe.at[:, 1::2].set(jnp.cos(angles))
    return pe.astype(dtype)


# ----------------------------------------------------------------------------
# Kernel 1: tiled matmul, bf16 operands, f32 VMEM accumulator (P3 pattern)
# ----------------------------------------------------------------------------
def _matmul_kernel(x_ref, w_ref, o_ref, acc_ref):
    @pl.when(pl.program_id(2) == 0)
    def _():
        acc_ref[...] = jnp.zeros_like(acc_ref)

    acc_ref[...] += jnp.dot(x_ref[...], w_ref[...],
                            preferred_element_type=jnp.float32)

    @pl.when(pl.program_id(2) == pl.num_programs(2) - 1)
    def _():
        o_ref[...] = acc_ref[...].astype(o_ref.dtype)


def matmul(x, w, out_dtype=jnp.float32):
    """(M, K) @ (K, N) -> (M, N).  Operands cast to bf16 for the MXU; f32 acc."""
    M, K = x.shape
    K2, N = w.shape
    assert K == K2
    x = x.astype(BF16)
    w = w.astype(BF16)
    tm, tn, tk = _tile(M, 256), _tile(N, 256), _tile(K, 512)
    return pl.pallas_call(
        _matmul_kernel,
        out_shape=jax.ShapeDtypeStruct((M, N), out_dtype),
        grid=(M // tm, N // tn, K // tk),
        in_specs=[pl.BlockSpec((tm, tk), lambda i, j, k: (i, k)),
                  pl.BlockSpec((tk, tn), lambda i, j, k: (k, j))],
        out_specs=pl.BlockSpec((tm, tn), lambda i, j, k: (i, j)),
        scratch_shapes=[pltpu.VMEM((tm, tn), jnp.float32)],
        compiler_params=pltpu.CompilerParams(
            dimension_semantics=("parallel", "parallel", "arbitrary")),
    )(x, w)


def linear(x, w, out_dtype=jnp.float32):
    """(B, S, K) @ (K, N) -> (B, S, N)."""
    B, S, K = x.shape
    return matmul(x.reshape(B * S, K), w, out_dtype).reshape(B, S, w.shape[1])


# ----------------------------------------------------------------------------
# Kernel 2: head-packed masked attention, tiled over (batch, q-tile)
# ----------------------------------------------------------------------------
def _attention_kernel(q_ref, k_ref, v_ref, pad_ref, ctx_ref, probs_ref, *,
                      n_heads, d_k, d_v, scale, causal):
    tq = q_ref.shape[0]
    Lk = k_ref.shape[0]
    q = q_ref[...]                          # (tq, H*dk)  bf16
    k = k_ref[...]                          # (Lk, H*dk)  bf16
    v = v_ref[...]                          # (Lk, H*dv)  bf16

    # Mask built in-kernel: pad part broadcast from (1, Lk); causal part from iota.
    masked = jnp.broadcast_to(pad_ref[...] != 0, (tq, Lk))
    if causal:
        row = pl.program_id(1) * tq + jax.lax.broadcasted_iota(jnp.int32, (tq, Lk), 0)
        col = jax.lax.broadcasted_iota(jnp.int32, (tq, Lk), 1)
        masked = jnp.logical_or(masked, col > row)

    dn_qk = (((1,), (1,)), ((), ()))        # contract last dims; no in-kernel k.T
    ctx_parts = []
    for h in range(n_heads):                # all heads handled per grid step
        qh = q[:, h * d_k:(h + 1) * d_k]
        kh = k[:, h * d_k:(h + 1) * d_k]
        vh = v[:, h * d_v:(h + 1) * d_v]
        s = jax.lax.dot_general(qh, kh, dn_qk,
                                preferred_element_type=jnp.float32) * scale
        s = jnp.where(masked, NEG_INF, s)
        m = jnp.max(s, axis=-1, keepdims=True)
        e = jnp.exp(s - m)
        p = e / jnp.sum(e, axis=-1, keepdims=True)
        probs_ref[h] = p.astype(probs_ref.dtype)
        ctx_parts.append(jnp.dot(p.astype(v.dtype), vh,
                                 preferred_element_type=jnp.float32))
    # Single lane-dense (tq, H*dv) store.
    ctx_ref[...] = jnp.concatenate(ctx_parts, axis=-1).astype(ctx_ref.dtype)


def scaled_dot_product_attention(q, k, v, pad_k, *, n_heads, d_k, d_v, causal):
    """q:(B,Lq,H*dk) k:(B,Lk,H*dk) v:(B,Lk,H*dv) bf16; pad_k:(B,1,Lk) int32."""
    B, Lq, _ = q.shape
    Lk = k.shape[1]
    tq = _seq_tile(Lq)
    kernel = functools.partial(_attention_kernel, n_heads=n_heads, d_k=d_k,
                               d_v=d_v, scale=1.0 / math.sqrt(d_k), causal=causal)
    return pl.pallas_call(
        kernel,
        out_shape=(jax.ShapeDtypeStruct((B, Lq, n_heads * d_v), BF16),
                   jax.ShapeDtypeStruct((B, n_heads, Lq, Lk), jnp.float32)),
        grid=(B, Lq // tq),
        in_specs=[
            pl.BlockSpec((None, tq, n_heads * d_k), lambda b, i: (b, i, 0)),
            pl.BlockSpec((None, Lk, n_heads * d_k), lambda b, i: (b, 0, 0)),
            pl.BlockSpec((None, Lk, n_heads * d_v), lambda b, i: (b, 0, 0)),
            pl.BlockSpec((None, 1, Lk), lambda b, i: (b, 0, 0)),
        ],
        out_specs=(
            pl.BlockSpec((None, tq, n_heads * d_v), lambda b, i: (b, i, 0)),
            pl.BlockSpec((None, n_heads, tq, Lk), lambda b, i: (b, 0, i, 0)),
        ),
        compiler_params=pltpu.CompilerParams(
            dimension_semantics=("parallel", "parallel")),
    )(q, k, v, pad_k)


# ----------------------------------------------------------------------------
# Kernel 3: attention output projection + residual + LayerNorm (fused)
# ----------------------------------------------------------------------------
def _proj_residual_ln_kernel(x_ref, w_ref, res_ref, o_ref):
    y = jnp.dot(x_ref[...], w_ref[...], preferred_element_type=jnp.float32)
    y = y + res_ref[...]
    mu = jnp.mean(y, axis=-1, keepdims=True)
    var = jnp.mean(jnp.square(y - mu), axis=-1, keepdims=True)
    o_ref[...] = ((y - mu) * jax.lax.rsqrt(var + LN_EPS)).astype(o_ref.dtype)


def proj_residual_layernorm(x, w, residual):
    """LayerNorm(x @ w + residual);  x:(B,S,Kin) bf16, w:(Kin,D), residual f32."""
    B, S, Kin = x.shape
    D = w.shape[1]
    ts = _seq_tile(S)
    return pl.pallas_call(
        _proj_residual_ln_kernel,
        out_shape=jax.ShapeDtypeStruct((B, S, D), jnp.float32),
        grid=(B, S // ts),
        in_specs=[
            pl.BlockSpec((None, ts, Kin), lambda b, s: (b, s, 0)),
            pl.BlockSpec((Kin, D), lambda b, s: (0, 0)),
            pl.BlockSpec((None, ts, D), lambda b, s: (b, s, 0)),
        ],
        out_specs=pl.BlockSpec((None, ts, D), lambda b, s: (b, s, 0)),
        compiler_params=pltpu.CompilerParams(
            dimension_semantics=("parallel", "parallel")),
    )(x.astype(BF16), w.astype(BF16), residual)


# ----------------------------------------------------------------------------
# Kernel 4: FFN (Linear -> ReLU -> Linear) + residual + LayerNorm, d_ff tiled
# ----------------------------------------------------------------------------
def _ffn_ln_kernel(x_ref, w1_ref, w2_ref, o_ref, acc_ref):
    ff = pl.program_id(2)

    @pl.when(ff == 0)
    def _():
        acc_ref[...] = jnp.zeros_like(acc_ref)

    x = x_ref[...]                                            # (ts, D) f32
    h = jnp.maximum(jnp.dot(x.astype(BF16), w1_ref[...],
                            preferred_element_type=jnp.float32), 0.0)
    acc_ref[...] += jnp.dot(h.astype(BF16), w2_ref[...],
                            preferred_element_type=jnp.float32)

    @pl.when(ff == pl.num_programs(2) - 1)
    def _():
        y = acc_ref[...] + x
        mu = jnp.mean(y, axis=-1, keepdims=True)
        var = jnp.mean(jnp.square(y - mu), axis=-1, keepdims=True)
        o_ref[...] = ((y - mu) * jax.lax.rsqrt(var + LN_EPS)).astype(o_ref.dtype)


def ffn_layernorm(x, w1, w2):
    """LayerNorm(ReLU(x @ w1) @ w2 + x);  d_ff tiled on an 'arbitrary' axis."""
    B, S, D = x.shape
    Dff = w1.shape[1]
    ts = _seq_tile(S)
    tff = _tile(Dff, 512)
    return pl.pallas_call(
        _ffn_ln_kernel,
        out_shape=jax.ShapeDtypeStruct((B, S, D), jnp.float32),
        grid=(B, S // ts, Dff // tff),
        in_specs=[
            pl.BlockSpec((None, ts, D), lambda b, s, f: (b, s, 0)),
            pl.BlockSpec((D, tff), lambda b, s, f: (0, f)),
            pl.BlockSpec((tff, D), lambda b, s, f: (f, 0)),
        ],
        out_specs=pl.BlockSpec((None, ts, D), lambda b, s, f: (b, s, 0)),
        scratch_shapes=[pltpu.VMEM((ts, D), jnp.float32)],
        compiler_params=pltpu.CompilerParams(
            dimension_semantics=("parallel", "parallel", "arbitrary")),
    )(x, w1.astype(BF16), w2.astype(BF16))


# ----------------------------------------------------------------------------
# Mask helpers
# ----------------------------------------------------------------------------
def pad_mask(seq_k):
    """(B, Lk) token ids -> (B, 1, Lk) int32, 1 where padding (id == 0)."""
    return (seq_k == 0).astype(jnp.int32)[:, None, :]


# (dense-mask builders kept only for the pure-JAX reference below)
def get_attn_pad_mask(seq_q, seq_k):
    B, Lq = seq_q.shape
    Lk = seq_k.shape[1]
    return jnp.broadcast_to((seq_k == 0)[:, None, :], (B, Lq, Lk))


def get_attn_subsequence_mask(seq):
    B, L = seq.shape
    sub = jnp.triu(jnp.ones((L, L), dtype=jnp.int32), k=1)
    return jnp.broadcast_to(sub[None], (B, L, L))


# ----------------------------------------------------------------------------
# Module composition (mirrors the PyTorch forward)
# ----------------------------------------------------------------------------
def multi_head_attention(p, input_Q, input_KV, pad_k, *, causal, is_self):
    # NOTE: the reference's `torch.transpose(V, 1, 1)` is a no-op typo; the
    # intended standard multi-head attention layout is implemented.
    H, dk, dv = p["n_heads"], p["d_k"], p["d_v"]
    if is_self:
        qkv = linear(input_Q, p["w_qkv"], BF16)          # fused Q/K/V GEMM
        q = qkv[..., :H * dk]
        k = qkv[..., H * dk:2 * H * dk]
        v = qkv[..., 2 * H * dk:]
    else:
        q = linear(input_Q, p["w_q"], BF16)
        kv = linear(input_KV, p["w_kv"], BF16)           # fused K/V GEMM
        k = kv[..., :H * dk]
        v = kv[..., H * dk:]
    ctx, probs = scaled_dot_product_attention(q, k, v, pad_k, n_heads=H,
                                              d_k=dk, d_v=dv, causal=causal)
    out = proj_residual_layernorm(ctx, p["w_fc"], input_Q)
    return out, probs


def encoder_forward(p, enc_inputs):
    # TODO(synk): nn.Embedding gather + PE add stay in plain JAX (XLA fuses the
    # gather with the add; a standalone Pallas elementwise kernel only adds an
    # extra HBM round trip and launch overhead).  Dropout is identity (eval).
    S = enc_inputs.shape[1]
    x = jnp.take(p["src_emb"], enc_inputs, axis=0) + p["pe"][:S][None]
    pad = pad_mask(enc_inputs)
    attns = []
    for lp in p["layers"]:
        x, a = multi_head_attention(lp["attn"], x, x, pad, causal=False, is_self=True)
        x = ffn_layernorm(x, lp["ffn"]["w1"], lp["ffn"]["w2"])
        attns.append(a)
    return x, attns


def decoder_forward(p, dec_inputs, enc_inputs, enc_outputs):
    S = dec_inputs.shape[1]
    y = jnp.take(p["tgt_emb"], dec_inputs, axis=0) + p["pe"][:S][None]
    pad_self = pad_mask(dec_inputs)
    pad_cross = pad_mask(enc_inputs)
    self_attns, cross_attns = [], []
    for lp in p["layers"]:
        y, sa = multi_head_attention(lp["self_attn"], y, y, pad_self,
                                     causal=True, is_self=True)
        y, ca = multi_head_attention(lp["cross_attn"], y, enc_outputs, pad_cross,
                                     causal=False, is_self=False)
        y = ffn_layernorm(y, lp["ffn"]["w1"], lp["ffn"]["w2"])
        self_attns.append(sa)
        cross_attns.append(ca)
    return y, self_attns, cross_attns


def transformer_forward(params, enc_inputs, dec_inputs):
    enc_out, enc_attns = encoder_forward(params["encoder"], enc_inputs)
    dec_out, dec_self_attns, dec_enc_attns = decoder_forward(
        params["decoder"], dec_inputs, enc_inputs, enc_out)
    B, T, D = dec_out.shape
    logits = matmul(dec_out.reshape(B * T, D), params["w_proj"])   # (B*T, vocab)
    return logits, enc_attns, dec_self_attns, dec_enc_attns


# ----------------------------------------------------------------------------
# Parameter init (nn.Linear-style uniform, nn.Embedding-style normal)
# ----------------------------------------------------------------------------
def init_params(key, *, d_model, d_k, d_v, d_ff, n_heads,
                src_vocab, enc_layers, tgt_vocab, dec_layers, max_len=64):
    keys = iter(jax.random.split(key, 256))

    def linear_w(fan_in, fan_out):
        bound = 1.0 / math.sqrt(fan_in)
        return jax.random.uniform(next(keys), (fan_in, fan_out), jnp.float32, -bound, bound)

    def mha():
        w_q = linear_w(d_model, n_heads * d_k)
        w_k = linear_w(d_model, n_heads * d_k)
        w_v = linear_w(d_model, n_heads * d_v)
        return dict(n_heads=n_heads, d_k=d_k, d_v=d_v,
                    w_q=w_q, w_k=w_k, w_v=w_v,
                    w_qkv=jnp.concatenate([w_q, w_k, w_v], axis=1),
                    w_kv=jnp.concatenate([w_k, w_v], axis=1),
                    w_fc=linear_w(n_heads * d_v, d_model))

    def ffn():
        return dict(w1=linear_w(d_model, d_ff), w2=linear_w(d_ff, d_model))

    pe = make_positional_encoding(d_model, max_len)
    enc = dict(src_emb=jax.random.normal(next(keys), (src_vocab, d_model), jnp.float32),
               pe=pe,
               layers=[dict(attn=mha(), ffn=ffn()) for _ in range(enc_layers)])
    dec = dict(tgt_emb=jax.random.normal(next(keys), (tgt_vocab, d_model), jnp.float32),
               pe=pe,
               layers=[dict(self_attn=mha(), cross_attn=mha(), ffn=ffn())
                       for _ in range(dec_layers)])
    return dict(encoder=enc, decoder=dec, w_proj=linear_w(d_model, tgt_vocab))


# ----------------------------------------------------------------------------
# Pure-JAX reference (same math incl. bf16 MXU operands / f32 accumulation)
# ----------------------------------------------------------------------------
def _bdot(a, b):
    return jnp.dot(a.astype(BF16), b.astype(BF16), preferred_element_type=jnp.float32)


def _ref_layernorm(y):
    mu = jnp.mean(y, axis=-1, keepdims=True)
    var = jnp.mean(jnp.square(y - mu), axis=-1, keepdims=True)
    return (y - mu) * jax.lax.rsqrt(var + LN_EPS)


def _ref_mha(p, q_in, kv_in, mask):
    B, Lq, D = q_in.shape
    Lk = kv_in.shape[1]
    H, dk, dv = p["n_heads"], p["d_k"], p["d_v"]
    Q = _bdot(q_in.reshape(B * Lq, D), p["w_q"]).reshape(B, Lq, H, dk).transpose(0, 2, 1, 3)
    K = _bdot(kv_in.reshape(B * Lk, D), p["w_k"]).reshape(B, Lk, H, dk).transpose(0, 2, 1, 3)
    V = _bdot(kv_in.reshape(B * Lk, D), p["w_v"]).reshape(B, Lk, H, dv).transpose(0, 2, 1, 3)
    s = jnp.einsum("bhqd,bhkd->bhqk", Q.astype(BF16), K.astype(BF16),
                   preferred_element_type=jnp.float32) / math.sqrt(dk)
    s = jnp.where(mask[:, None], NEG_INF, s)
    probs = jax.nn.softmax(s, axis=-1)
    ctx = jnp.einsum("bhqk,bhkd->bhqd", probs.astype(BF16), V.astype(BF16),
                     preferred_element_type=jnp.float32)
    ctx = ctx.transpose(0, 2, 1, 3).reshape(B, Lq, H * dv)
    out = _ref_layernorm(
        _bdot(ctx.reshape(B * Lq, H * dv), p["w_fc"]).reshape(B, Lq, D) + q_in)
    return out, probs


def _ref_ffn(p, x):
    B, S, D = x.shape
    h = jnp.maximum(_bdot(x.reshape(B * S, D), p["w1"]), 0.0)
    y = _bdot(h, p["w2"]).reshape(B, S, D) + x
    return _ref_layernorm(y)


def transformer_reference(params, enc_inputs, dec_inputs):
    pe = params["encoder"]["pe"]
    S = enc_inputs.shape[1]
    x = jnp.take(params["encoder"]["src_emb"], enc_inputs, axis=0) + pe[:S][None]
    enc_mask = get_attn_pad_mask(enc_inputs, enc_inputs)
    enc_attns = []
    for lp in params["encoder"]["layers"]:
        x, a = _ref_mha(lp["attn"], x, x, enc_mask)
        x = _ref_ffn(lp["ffn"], x)
        enc_attns.append(a)
    enc_out = x

    T = dec_inputs.shape[1]
    y = jnp.take(params["decoder"]["tgt_emb"], dec_inputs, axis=0) + pe[:T][None]
    pad = get_attn_pad_mask(dec_inputs, dec_inputs).astype(jnp.int32)
    sub = get_attn_subsequence_mask(dec_inputs)
    self_mask = (pad + sub) > 0
    cross_mask = get_attn_pad_mask(dec_inputs, enc_inputs)
    dec_self, dec_cross = [], []
    for lp in params["decoder"]["layers"]:
        y, sa = _ref_mha(lp["self_attn"], y, y, self_mask)
        y, ca = _ref_mha(lp["cross_attn"], y, enc_out, cross_mask)
        y = _ref_ffn(lp["ffn"], y)
        dec_self.append(sa)
        dec_cross.append(ca)
    logits = _bdot(y.reshape(-1, y.shape[-1]), params["w_proj"])
    return logits, enc_attns, dec_self, dec_cross


# ----------------------------------------------------------------------------
if __name__ == "__main__":
    # Small, lane-dense demo config (d_model, d_ff, n_heads*d_k, vocab are
    # multiples of 128 so every kernel's output last dim is lane-dense).
    d_model, d_k, d_v, d_ff, n_heads = 128, 32, 32, 256, 4
    src_vocab, tgt_vocab = 128, 128
    enc_layers, dec_layers = 2, 2
    B, src_len, tgt_len = 2, 8, 8

    key = jax.random.PRNGKey(0)
    params = init_params(key, d_model=d_model, d_k=d_k, d_v=d_v, d_ff=d_ff,
                         n_heads=n_heads, src_vocab=src_vocab, enc_layers=enc_layers,
                         tgt_vocab=tgt_vocab, dec_layers=dec_layers, max_len=64)

    # Token ids (0 = padding) exercising both padding and causal masks.
    enc_inputs = jnp.array([[5, 7, 2, 9, 4, 3, 0, 0],
                            [11, 6, 8, 1, 13, 0, 0, 0]], dtype=jnp.int32)
    dec_inputs = jnp.array([[3, 4, 9, 2, 7, 0, 0, 0],
                            [6, 2, 5, 8, 1, 4, 0, 0]], dtype=jnp.int32)

    logits, enc_attns, dec_self_attns, dec_enc_attns = transformer_forward(
        params, enc_inputs, dec_inputs)
    logits = jax.block_until_ready(logits)

    # Pure-JAX reference of the same forward pass (same bf16 GEMM numerics).
    ref_logits, ref_enc_attns, ref_dec_self, _ = transformer_reference(
        params, enc_inputs, dec_inputs)
    ref_logits = jax.block_until_ready(ref_logits)

    assert logits.shape == (B * tgt_len, tgt_vocab)
    assert len(enc_attns) == enc_layers
    assert enc_attns[0].shape == (B, n_heads, src_len, src_len)
    assert len(dec_self_attns) == dec_layers and len(dec_enc_attns) == dec_layers
    assert dec_self_attns[0].shape == (B, n_heads, tgt_len, tgt_len)
    assert bool(jnp.all(jnp.isfinite(logits)))
    assert jnp.allclose(logits, ref_logits, atol=2e-2, rtol=2e-2), (
        "logits mismatch, max abs diff = %f" % float(jnp.max(jnp.abs(logits - ref_logits))))
    assert jnp.allclose(enc_attns[0], ref_enc_attns[0], atol=2e-2, rtol=2e-2), (
        "encoder attention mismatch")
    assert jnp.allclose(dec_self_attns[0], ref_dec_self[0], atol=2e-2, rtol=2e-2), (
        "decoder self-attention mismatch")

    print("KERNEL_OK")
</pallas_src>

<mosaic_0001>
module attributes {stable_mosaic.version = 11 : i64} {
  func.func @_matmul_kernel(%arg0: i32, %arg1: i32, %arg2: i32, %arg3: memref<16x128xbf16, #tpu.memory_space<vmem>>, %arg4: memref<128x384xbf16, #tpu.memory_space<vmem>>, %arg5: memref<16x384xbf16, #tpu.memory_space<vmem>>, %arg6: memref<16x384xf32, #tpu.memory_space<vmem>>) attributes {dimension_semantics = [#tpu.dimension_semantics<parallel>, #tpu.dimension_semantics<parallel>, #tpu.dimension_semantics<arbitrary>], iteration_bounds = array<i64: 1, 1, 1>, scalar_prefetch = 0 : i64, scratch_operands = 1 : i64, tpu.core_type = #tpu.core_type<tc>, window_params = [{transform_indices = @transform_0, window_bounds = array<i64: 16, 128>}, {transform_indices = @transform_1, window_bounds = array<i64: 128, 384>}, {transform_indices = @transform_2, window_bounds = array<i64: 16, 384>}]} {
    %c0_i32 = arith.constant 0 : i32
    %0 = arith.cmpi eq, %arg2, %c0_i32 : i32
    %1 = arith.extui %0 : i1 to i32
    %c0_i32_0 = arith.constant 0 : i32
    %2 = arith.cmpi ne, %1, %c0_i32_0 : i32
    scf.if %2 {
      %cst_10 = arith.constant 0.000000e+00 : f32
      %12 = vector.broadcast %cst_10 : f32 to vector<16x384xf32>
      %c0_11 = arith.constant 0 : index
      %c0_12 = arith.constant 0 : index
      %13 = vector.load %arg6[%c0_11, %c0_12] : memref<16x384xf32, #tpu.memory_space<vmem>>, vector<16x384xf32>
      tpu.vector_store %arg6[%c0_11, %c0_12], %12 {strides = array<i32>} : memref<16x384xf32, #tpu.memory_space<vmem>>, vector<16x384xf32>,
    } else {
    }
    %c0 = arith.constant 0 : index
    %c0_1 = arith.constant 0 : index
    %3 = vector.load %arg6[%c0, %c0_1] : memref<16x384xf32, #tpu.memory_space<vmem>>, vector<16x384xf32>
    %c0_2 = arith.constant 0 : index
    %c0_3 = arith.constant 0 : index
    %4 = vector.load %arg3[%c0_2, %c0_3] : memref<16x128xbf16, #tpu.memory_space<vmem>>, vector<16x128xbf16>
    %c0_4 = arith.constant 0 : index
    %c0_5 = arith.constant 0 : index
    %5 = vector.load %arg4[%c0_4, %c0_5] : memref<128x384xbf16, #tpu.memory_space<vmem>>, vector<128x384xbf16>
    %cst = arith.constant dense<0.000000e+00> : vector<16x384xf32>
    %6 = tpu.matmul %4, %5, %cst {dimension_numbers = #tpu.dot_dimension_numbers<[1], [0], [0], [1], [0, 0, 1, 1], [], []>} : vector<16x128xbf16>, vector<128x384xbf16>, vector<16x384xf32> -> vector<16x384xf32>
    %7 = arith.addf %3, %6 : vector<16x384xf32>
    %c0_6 = arith.constant 0 : index
    %c0_7 = arith.constant 0 : index
    %8 = vector.load %arg6[%c0_6, %c0_7] : memref<16x384xf32, #tpu.memory_space<vmem>>, vector<16x384xf32>
    tpu.vector_store %arg6[%c0_6, %c0_7], %7 {strides = array<i32>} : memref<16x384xf32, #tpu.memory_space<vmem>>, vector<16x384xf32>,
    %c0_i32_8 = arith.constant 0 : i32
    %9 = arith.cmpi eq, %arg2, %c0_i32_8 : i32
    %10 = arith.extui %9 : i1 to i32
    %c0_i32_9 = arith.constant 0 : i32
    %11 = arith.cmpi ne, %10, %c0_i32_9 : i32
    scf.if %11 {
      %c0_10 = arith.constant 0 : index
      %c0_11 = arith.constant 0 : index
      %12 = vector.load %arg6[%c0_10, %c0_11] : memref<16x384xf32, #tpu.memory_space<vmem>>, vector<16x384xf32>
      %13 = arith.truncf %12 : vector<16x384xf32> to vector<16x384xbf16>
      %c0_12 = arith.constant 0 : index
      %c0_13 = arith.constant 0 : index
      %14 = vector.load %arg5[%c0_12, %c0_13] : memref<16x384xbf16, #tpu.memory_space<vmem>>, vector<16x384xbf16>
      tpu.vector_store %arg5[%c0_12, %c0_13], %13 {strides = array<i32>} : memref<16x384xbf16, #tpu.memory_space<vmem>>, vector<16x384xbf16>,
    } else {
    }
    return
  }
  func.func @transform_0(%arg0: i32, %arg1: i32, %arg2: i32) -> (i32, i32) {
    %c0_i32 = arith.constant 0 : i32
    return %arg0, %arg2 : i32, i32
  }
  func.func @transform_1(%arg0: i32, %arg1: i32, %arg2: i32) -> (i32, i32) {
    %c0_i32 = arith.constant 0 : i32
    return %arg2, %arg1 : i32, i32
  }
  func.func @transform_2(%arg0: i32, %arg1: i32, %arg2: i32) -> (i32, i32) {
    %c0_i32 = arith.constant 0 : i32
    return %arg0, %arg1 : i32, i32
  }
}

</mosaic_0001>

<llo_original>
// kernel: tpu_custom_call.1
$region0: #{tpu_custom_call.1}
  #allocation0 [shape = 'u32[]', space=smem, size = 0x4, offset = 0x4, fixed_abs, tag = 'smem constant byte address 0x4 - core index']
  #allocation1 [shape = 'u32[72,128]{1,0:T(1,128)}', space=vmem, size = 0x9000, scoped, tag = 'internal scratch']
  #allocation2 [shape = 'f32[16,384]{1,0:T(8,128)}', space=vmem, size = 0x6000, scoped, tag = 'scratch operand']
  %s0 = inlined_call_operand.hbm [shape: bf16[16,128], index: 0, kind: input, shape index: {}]
  %s1 = inlined_call_operand.hbm [shape: bf16[128,384], index: 1, kind: input, shape index: {}]
  %s2 = inlined_call_operand.hbm [shape: bf16[16,384], index: 2, kind: output, shape index: {}]
  %s3 = sld [smem:[#allocation0]]
  $region34: #{tpu_custom_call.1} parent=0
    _
  %s5 = ssub.s32 1, %s3
  %s6 = scalar_select 0, %s5, %s3
  $region1: #{tpu_custom_call.1} parent=0
    #allocation3 [shape = 'u8[4096]{0}', space=vmem, size = 0x1000, scoped, tag = 'input window, operand 0, single buffered']
    #allocation4 [shape = 's32[1]{0}', space=sflag, size = 0x4, scoped, tag = 'scoped memory for tpu_custom_call.1']
    #allocation5 [shape = 's32[1]{0}', space=sflag, size = 0x4, scoped, tag = 'scoped memory for tpu_custom_call.1']
    #allocation6 [shape = 'u8[98304]{0}', space=vmem, size = 0x18000, scoped, tag = 'input window, operand 1, single buffered']
    #allocation7 [shape = 's32[1]{0}', space=sflag, size = 0x4, scoped, tag = 'scoped memory for tpu_custom_call.1']
    #allocation8 [shape = 'u8[12288]{0}', space=vmem, size = 0x3000, scoped, tag = 'output window, operand 0, single buffered']
    %7 = vsyncpa [#allocation4], 0
    %8 = vsyncpa [#allocation7], 0
    %9 = vsyncpa [#allocation5], 0
    // Predicated region
    $region2: #{tpu_custom_call.1} parent=1 // pred_check
      _
    $region3: #{tpu_custom_call.1} parent=1 // pred_check_branch
      %11 = sbr.rel (0) target = $region5
    $region4: #{tpu_custom_call.1} parent=1 // pred_region
      %13 = vsyncadd [#allocation4], 0
      %s14 = sshll.u32 %s0, 4
      %s15 = int_to_ptr.hbm [resolvable:$true] %s14
      %s16 = sshll.u32 [#allocation3], 4
      %s17 = int_to_ptr.vmem [resolvable:$true] %s16
      %22 = dma.hbm_to_vmem [thread:$0]  %s15, 128, %s17, [#allocation4], 64, 64, 4
    $region5: #{tpu_custom_call.1} parent=1 // pred_fallthru
      _
    // Predicated region
    $region6: #{tpu_custom_call.1} parent=1 // pred_check
      _
    $region7: #{tpu_custom_call.1} parent=1 // pred_check_branch
      %24 = sbr.rel (0) target = $region9
    $region8: #{tpu_custom_call.1} parent=1 // pred_region
      %26 = vsyncadd [#allocation7], 0
      %s27 = sshll.u32 %s1, 4
      %s28 = int_to_ptr.hbm [resolvable:$true] %s27
      %s29 = sshll.u32 [#allocation6], 4
      %s30 = int_to_ptr.vmem [resolvable:$true] %s29
      %35 = dma.hbm_to_vmem [thread:$0]  %s28, 3072, %s30, [#allocation7], 192, 192, 12
    $region9: #{tpu_custom_call.1} parent=1 // pred_fallthru
      _
    // Predicated region
    $region10: #{tpu_custom_call.1} parent=1 // pred_check
      _
    $region11: #{tpu_custom_call.1} parent=1 // pred_check_branch
      %37 = sbr.rel (0) target = $region13
    $region12: #{tpu_custom_call.1} parent=1 // pred_region
      %39 = dma.done [#allocation4], 128
    $region13: #{tpu_custom_call.1} parent=1 // pred_fallthru
      _
    // Predicated region
    $region14: #{tpu_custom_call.1} parent=1 // pred_check
      _
    $region15: #{tpu_custom_call.1} parent=1 // pred_check_branch
      %41 = sbr.rel (0) target = $region17
    $region16: #{tpu_custom_call.1} parent=1 // pred_region
      %43 = dma.done [#allocation7], 3072
    $region17: #{tpu_custom_call.1} parent=1 // pred_fallthru
      _
    %p44 = scmp.eq.s32.totalorder 0, 0
    // Predicated region
    $region18: #{tpu_custom_call.1} parent=1 // pred_check
      %p45 = pneg %p44
    $region19: #{tpu_custom_call.1} parent=1 // pred_check_branch
      %47 = sbr.rel (%p45) target = $region21
    $region20: #{tpu_custom_call.1} parent=1 // pred_region
      %48 = vst [vmem:[#allocation2] sm:$0xff] 0.0
      %49 = vst [vmem:[#allocation2 + $0x8] sm:$0xff] 0.0
      %50 = vst [vmem:[#allocation2 + $0x10] sm:$0xff] 0.0
      %51 = vst [vmem:[#allocation2 + $0x18] sm:$0xff] 0.0
      %52 = vst [vmem:[#allocation2 + $0x20] sm:$0xff] 0.0
      %53 = vst [vmem:[#allocation2 + $0x28] sm:$0xff] 0.0
    $region21: #{tpu_custom_call.1} parent=1 // pred_fallthru
      _
    %v54 = vld [vmem:[#allocation2] sm:$0xff]
    %v55 = vld [vmem:[#allocation2 + $0x8] sm:$0xff]
    %v56 = vld [vmem:[#allocation2 + $0x10] sm:$0xff]
    %v57 = vld [vmem:[#allocation2 + $0x18] sm:$0xff]
    %v58 = vld [vmem:[#allocation2 + $0x20] sm:$0xff]
    %v59 = vld [vmem:[#allocation2 + $0x28] sm:$0xff]
    %v60 = vld [vmem:[#allocation3] sm:$0xf]
    %v61 = vld [vmem:[#allocation3 + $0x4] sm:$0xf]
    %v62 = vld [vmem:[#allocation6] sm:$0xff]
    %v63 = vld [vmem:[#allocation6 + $0x8] sm:$0xf]
    %v64 = vld [vmem:[#allocation6 + $0xc] sm:$0xff]
    %v65 = vld [vmem:[#allocation6 + $0x14] sm:$0xf]
    %v66 = vld [vmem:[#allocation6 + $0x18] sm:$0xff]
    %v67 = vld [vmem:[#allocation6 + $0x20] sm:$0xf]
    %v68 = vld [vmem:[#allocation6 + $0x24] sm:$0xff]
    %v69 = vld [vmem:[#allocation6 + $0x2c] sm:$0xf]
    %v70 = vld [vmem:[#allocation6 + $0x30] sm:$0xff]
    %v71 = vld [vmem:[#allocation6 + $0x38] sm:$0xf]
    %v72 = vld [vmem:[#allocation6 + $0x3c] sm:$0xff]
    %v73 = vld [vmem:[#allocation6 + $0x44] sm:$0xf]
    %v74 = vld [vmem:[#allocation6 + $0x48] sm:$0xff]
    %v75 = vld [vmem:[#allocation6 + $0x50] sm:$0xf]
    %v76 = vld [vmem:[#allocation6 + $0x54] sm:$0xff]
    %v77 = vld [vmem:[#allocation6 + $0x5c] sm:$0xf]
    %v78 = vld [vmem:[#allocation6 + $0x60] sm:$0xff]
    %v79 = vld [vmem:[#allocation6 + $0x68] sm:$0xf]
    %v80 = vld [vmem:[#allocation6 + $0x6c] sm:$0xff]
    %v81 = vld [vmem:[#allocation6 + $0x74] sm:$0xf]
    %v82 = vld [vmem:[#allocation6 + $0x78] sm:$0xff]
    %v83 = vld [vmem:[#allocation6 + $0x80] sm:$0xf]
    %v84 = vld [vmem:[#allocation6 + $0x84] sm:$0xff]
    %v85 = vld [vmem:[#allocation6 + $0x8c] sm:$0xf]
    %v86 = vld [vmem:[#allocation6 + $0x90] sm:$0xff]
    %v87 = vld [vmem:[#allocation6 + $0x98] sm:$0xf]
    %v88 = vld [vmem:[#allocation6 + $0x9c] sm:$0xff]
    %v89 = vld [vmem:[#allocation6 + $0xa4] sm:$0xf]
    %v90 = vld [vmem:[#allocation6 + $0xa8] sm:$0xff]
    %v91 = vld [vmem:[#allocation6 + $0xb0] sm:$0xf]
    %v92 = vld [vmem:[#allocation6 + $0xb4] sm:$0xff]
    %v93 = vld [vmem:[#allocation6 + $0xbc] sm:$0xf]
    %v96 = vunpack.c.l.b16 %v60
    %v97 = vunpack.c.l.b16 %v61
    %v98 = vpack.c.b16 %v97, %v96
    %v132 = vunpack.c.l.b16 %v62
    %v133 = vunpack.c.h.b16 %v62
    %v134 = vunpack.c.l.b16 %v63
    %v135 = vunpack.c.l.b16 %v64
    %v136 = vunpack.c.h.b16 %v64
    %v137 = vunpack.c.l.b16 %v65
    %v138 = vunpack.c.l.b16 %v66
    %v139 = vunpack.c.h.b16 %v66
    %v140 = vunpack.c.l.b16 %v67
    %v141 = vunpack.c.l.b16 %v68
    %v142 = vunpack.c.h.b16 %v68
    %v143 = vunpack.c.l.b16 %v69
    %v144 = vunpack.c.l.b16 %v70
    %v145 = vunpack.c.h.b16 %v70
    %v146 = vunpack.c.l.b16 %v71
    %v147 = vunpack.c.l.b16 %v72
    %v148 = vunpack.c.h.b16 %v72
    %v149 = vunpack.c.l.b16 %v73
    %v150 = vunpack.c.l.b16 %v74
    %v151 = vunpack.c.h.b16 %v74
    %v152 = vunpack.c.l.b16 %v75
    %v153 = vunpack.c.l.b16 %v76
    %v154 = vunpack.c.h.b16 %v76
    %v155 = vunpack.c.l.b16 %v77
    %v156 = vunpack.c.l.b16 %v78
    %v157 = vunpack.c.h.b16 %v78
    %v158 = vunpack.c.l.b16 %v79
    %v159 = vunpack.c.l.b16 %v80
    %v160 = vunpack.c.h.b16 %v80
    %v161 = vunpack.c.l.b16 %v81
    %v162 = vunpack.c.l.b16 %v82
    %v163 = vunpack.c.h.b16 %v82
    %v164 = vunpack.c.l.b16 %v83
    %v165 = vunpack.c.l.b16 %v84
    %v166 = vunpack.c.h.b16 %v84
    %v167 = vunpack.c.l.b16 %v85
    %v168 = vunpack.c.l.b16 %v86
    %v169 = vunpack.c.h.b16 %v86
    %v170 = vunpack.c.l.b16 %v87
    %v171 = vunpack.c.l.b16 %v88
    %v172 = vunpack.c.h.b16 %v88
    %v173 = vunpack.c.l.b16 %v89
    %v174 = vunpack.c.l.b16 %v90
    %v175 = vunpack.c.h.b16 %v90
    %v176 = vunpack.c.l.b16 %v91
    %v177 = vunpack.c.l.b16 %v92
    %v178 = vunpack.c.h.b16 %v92
    %v179 = vunpack.c.l.b16 %v93
    %v180 = vpack.c.b16 %v135, %v132
    %v181 = vpack.c.b16 %v136, %v133
    %v182 = vpack.c.b16 %v137, %v134
    %v183 = vpack.c.b16 %v141, %v138
    %v184 = vpack.c.b16 %v142, %v139
    %v185 = vpack.c.b16 %v143, %v140
    %v186 = vpack.c.b16 %v147, %v144
    %v187 = vpack.c.b16 %v148, %v145
    %v188 = vpack.c.b16 %v149, %v146
    %v189 = vpack.c.b16 %v153, %v150
    %v190 = vpack.c.b16 %v154, %v151
    %v191 = vpack.c.b16 %v155, %v152
    %v192 = vpack.c.b16 %v159, %v156
    %v193 = vpack.c.b16 %v160, %v157
    %v194 = vpack.c.b16 %v161, %v158
    %v195 = vpack.c.b16 %v165, %v162
    %v196 = vpack.c.b16 %v166, %v163
    %v197 = vpack.c.b16 %v167, %v164
    %v198 = vpack.c.b16 %v171, %v168
    %v199 = vpack.c.b16 %v172, %v169
    %v200 = vpack.c.b16 %v173, %v170
    %v201 = vpack.c.b16 %v177, %v174
    %v202 = vpack.c.b16 %v178, %v175
    %v203 = vpack.c.b16 %v179, %v176
    %228 = vmatpush.bf16.msra.mxu0 %v201
    %229 = vmatpush.bf16.msra.mxu0 %v198
    %230 = vmatpush.bf16.msra.mxu0 %v195
    %231 = vmatpush.bf16.msra.mxu0 %v192
    %232 = vmatpush.bf16.msra.mxu0 %v189
    %233 = vmatpush.bf16.msra.mxu0 %v186
    %234 = vmatpush.bf16.msra.mxu0 %v183
    %235 = vmatpush.bf16.msra.mxu0 %v180
    %236 = vmatmul.bf16.gmra.mxu0 %v98
    %v237 = vpop.f32.mrf.mxu0
    %v238 = vadd.f32 0.0, %v237
    %v239 = vpop.f32.mrf.mxu0
    %v240 = vadd.f32 0.0, %v239
    %241 = vdwg.mxu0
    %242 = vmatpush.bf16.msra.mxu0 %v202
    %243 = vmatpush.bf16.msra.mxu0 %v199
    %244 = vmatpush.bf16.msra.mxu0 %v196
    %245 = vmatpush.bf16.msra.mxu0 %v193
    %246 = vmatpush.bf16.msra.mxu0 %v190
    %247 = vmatpush.bf16.msra.mxu0 %v187
    %248 = vmatpush.bf16.msra.mxu0 %v184
    %249 = vmatpush.bf16.msra.mxu0 %v181
    %250 = vmatmul.bf16.gmra.mxu0 %v98
    %v251 = vpop.f32.mrf.mxu0
    %v252 = vadd.f32 0.0, %v251
    %v253 = vpop.f32.mrf.mxu0
    %v254 = vadd.f32 0.0, %v253
    %255 = vdwg.mxu0
    %256 = vmatpush.bf16.msra.mxu0 %v203
    %257 = vmatpush.bf16.msra.mxu0 %v200
    %258 = vmatpush.bf16.msra.mxu0 %v197
    %259 = vmatpush.bf16.msra.mxu0 %v194
    %260 = vmatpush.bf16.msra.mxu0 %v191
    %261 = vmatpush.bf16.msra.mxu0 %v188
    %262 = vmatpush.bf16.msra.mxu0 %v185
    %263 = vmatpush.bf16.msra.mxu0 %v182
    %264 = vmatmul.bf16.gmra.mxu0 %v98
    %v265 = vpop.f32.mrf.mxu0
    %v266 = vadd.f32 0.0, %v265
    %v267 = vpop.f32.mrf.mxu0
    %v268 = vadd.f32 0.0, %v267
    %269 = vdwg.mxu0
    %v270 = vadd.f32 %v54, %v238
    %v271 = vadd.f32 %v55, %v252
    %v272 = vadd.f32 %v56, %v266
    %v273 = vadd.f32 %v57, %v240
    %v274 = vadd.f32 %v58, %v254
    %v275 = vadd.f32 %v59, %v268
    %276 = vst [vmem:[#allocation2] sm:$0xff] %v270
    %277 = vst [vmem:[#allocation2 + $0x8] sm:$0xff] %v271
    %278 = vst [vmem:[#allocation2 + $0x10] sm:$0xff] %v272
    %279 = vst [vmem:[#allocation2 + $0x18] sm:$0xff] %v273
    %280 = vst [vmem:[#allocation2 + $0x20] sm:$0xff] %v274
    %281 = vst [vmem:[#allocation2 + $0x28] sm:$0xff] %v275
    // Predicated region
    $region22: #{tpu_custom_call.1} parent=1 // pred_check
      %p282 = pneg %p44
    $region23: #{tpu_custom_call.1} parent=1 // pred_check_branch
      %284 = sbr.rel (%p282) target = $region25
    $region24: #{tpu_custom_call.1} parent=1 // pred_region
      %v285 = vld [vmem:[#allocation2] sm:$0xff]
      %v286 = vld [vmem:[#allocation2 + $0x8] sm:$0xff]
      %v287 = vld [vmem:[#allocation2 + $0x10] sm:$0xff]
      %v288 = vld [vmem:[#allocation2 + $0x18] sm:$0xff]
      %v289 = vld [vmem:[#allocation2 + $0x20] sm:$0xff]
      %v290 = vld [vmem:[#allocation2 + $0x28] sm:$0xff]
      %v291 = vpack.c.bf16 %v286, %v285
      %v292 = vpack.c.bf16 %v287, %v287
      %v293 = vpack.c.bf16 %v289, %v288
      %v294 = vpack.c.bf16 %v290, %v290
      %295 = vst [vmem:[#allocation8] sm:$0xff] %v291
      %296 = vst [vmem:[#allocation8 + $0x8] sm:$0xf] %v292
      %297 = vst [vmem:[#allocation8 + $0xc] sm:$0xff] %v293
      %298 = vst [vmem:[#allocation8 + $0x14] sm:$0xf] %v294
    $region25: #{tpu_custom_call.1} parent=1 // pred_fallthru
      _
    // Predicated region
    $region26: #{tpu_custom_call.1} parent=1 // pred_check
      _
    $region27: #{tpu_custom_call.1} parent=1 // pred_check_branch
      %300 = sbr.rel (0) target = $region29
    $region28: #{tpu_custom_call.1} parent=1 // pred_region
      %302 = vsyncadd [#allocation5], 0
      %s303 = sshll.u32 [#allocation8], 4
      %s304 = int_to_ptr.vmem [resolvable:$true] %s303
      %s305 = sshll.u32 %s2, 4
      %s306 = int_to_ptr.hbm [resolvable:$true] %s305
      %311 = dma.vmem_to_hbm [thread:$0]  %s304, 384, %s306, [#allocation5], 192, 192, 12
    $region29: #{tpu_custom_call.1} parent=1 // pred_fallthru
      _
    // Predicated region
    $region30: #{tpu_custom_call.1} parent=1 // pred_check
      _
    $region31: #{tpu_custom_call.1} parent=1 // pred_check_branch
      %313 = sbr.rel (0) target = $region33
    $region32: #{tpu_custom_call.1} parent=1 // pred_region
      %315 = dma.done [#allocation5], 384
    $region33: #{tpu_custom_call.1} parent=1 // pred_fallthru
      _
    %316 = vsyncpa [#allocation4], 1
    %317 = vsyncpa [#allocation7], 1
    %318 = vsyncpa [#allocation5], 1

</llo_original>
